<compile_context>
chip_gen: v7x
topology: tpu7x:2x2x1
jax: 0.10.0
libtpu: 0.0.40
codegen_flags: <defaults>
</compile_context>

<pallas_src>
import jax
import jax.numpy as jnp
from jax.experimental import pallas as pl
from jax.experimental.pallas import tpu as pltpu


def _pad_to(n, m):
    return -(-n // m) * m


def _vmem_capacity_bytes():
    """Physical VMEM per TensorCore; conservative fallback if the query fails."""
    try:
        info = pltpu.get_tpu_info()
        cap = getattr(info, "vmem_capacity_bytes", None)
        if cap:
            return int(cap)
    except Exception:
        pass
    return 64 * 1024 * 1024  # v7x per-TC VMEM (smallest current part)


def _pick_lane_tile(hw, per_lane_bytes, budget_bytes, cap=8192):
    """Largest spatial (lane) tile: multiple of 128, <= cap, fitting budget_bytes."""
    t = (max(budget_bytes, 0) // max(per_lane_bytes, 1)) // 128 * 128
    t = int(max(128, min(t, cap)))
    if hw <= t:
        return hw  # single full-extent block (always a legal block dim)
    return t


def conv_bn_relu(x_nchw, weight, gamma, beta, *, eps=1e-5,
                 compute_dtype=jnp.float32, out_dtype=None):
    """Forward of Conv(in_chans, out_chans, kernel_size=1, stride=1, groups=1):
    ReLU(BatchNorm2d(Conv2d(x))) with train-mode (per-batch) BN statistics."""
    N, Cin, H, W = x_nchw.shape
    Cout = weight.shape[0]
    HW = H * W
    M = N * HW
    out_dtype = x_nchw.dtype if out_dtype is None else out_dtype
    compute_dtype = jnp.dtype(compute_dtype)
    cast_in_kernel = compute_dtype != jnp.dtype(x_nchw.dtype)

    # Free reshapes only: no transposes, no extra HBM copy of x.
    x = x_nchw.reshape(N, Cin, HW)
    w32 = weight[:, :, 0, 0].astype(jnp.float32)      # (Cout, Cin) f32 master copy
    w_c = w32.astype(compute_dtype)                   # tiny cast in XLA

    # ---------------- dtype- and weight-aware VMEM budgeting ----------------
    xbytes = jnp.dtype(x.dtype).itemsize
    obytes = jnp.dtype(out_dtype).itemsize
    wbytes = compute_dtype.itemsize
    phys = _vmem_capacity_bytes()                     # 128 MiB v5e/v6e, 64 MiB v7x
    vmem_limit = int(phys * 3 // 4)                   # ~96 MiB / ~48 MiB
    slack = 2 * 1024 * 1024                           # internal scratch, misc blocks

    # Resident (constant-index) blocks are still double-buffered by default -> charge 2x.
    weight_res = 2 * wbytes * _pad_to(Cout, 8) * _pad_to(Cin, 128)
    stats_res = 2 * 2 * 4 * _pad_to(Cout, 8) * 128    # two f32 (Cout,1) outputs
    shift_res = 2 * 4 * _pad_to(Cout, 8) * 128

    # Pass 1 streams only the x tile; pass 2 also streams the (Cout, t) output tile.
    per_lane1 = 2 * xbytes * _pad_to(Cin, 8)
    per_lane2 = 2 * (xbytes * _pad_to(Cin, 8) + obytes * _pad_to(Cout, 8))
    t1 = _pick_lane_tile(HW, per_lane1, vmem_limit - weight_res - stats_res - slack)
    t2 = _pick_lane_tile(HW, per_lane2, vmem_limit - weight_res - shift_res - slack)

    n_hw1 = pl.cdiv(HW, t1)
    n_hw2 = pl.cdiv(HW, t2)
    mask_p1 = (HW % t1) != 0

    # Split pass-1 spatial tiles across a second "parallel" axis so a v7x megacore can
    # use both TensorCores even when N == 1 (harmless serial axis on v5e/v6e).
    P = 2 if (n_hw1 >= 2 and n_hw1 % 2 == 0) else 1
    n_hw_p = n_hw1 // P

    # ---------------- pass 1: partial channel stats of y = W @ x ----------------
    def stats_kernel(x_ref, w_ref, sum_ref, sq_ref):
        p = pl.program_id(1)
        j = pl.program_id(2)

        @pl.when(j == 0)
        def _():
            sum_ref[...] = jnp.zeros_like(sum_ref)
            sq_ref[...] = jnp.zeros_like(sq_ref)

        xv = x_ref[...]                               # (Cin, t1), native dtype
        if cast_in_kernel:
            xv = xv.astype(compute_dtype)             # in-register cast, feeds MXU bf16
        if mask_p1:
            # Mask the (cheap) x tile, not the (Cout, t) y tile: zero x columns past HW.
            jj = p * n_hw_p + j
            lane = jax.lax.broadcasted_iota(jnp.int32, xv.shape, 1)
            xv = jnp.where(jj * t1 + lane < HW, xv, jnp.zeros_like(xv))
        y = jnp.dot(w_ref[...], xv, preferred_element_type=jnp.float32)
        sum_ref[...] += jnp.sum(y, axis=1, keepdims=True)
        sq_ref[...] += jnp.sum(y * y, axis=1, keepdims=True)

    psum, psq = pl.pallas_call(
        stats_kernel,
        out_shape=(
            jax.ShapeDtypeStruct((N, P, Cout, 1), jnp.float32),
            jax.ShapeDtypeStruct((N, P, Cout, 1), jnp.float32),
        ),
        grid_spec=pltpu.PrefetchScalarGridSpec(
            num_scalar_prefetch=0,
            grid=(N, P, n_hw_p),
            in_specs=[
                pl.BlockSpec((None, Cin, t1), lambda n, p, j: (n, 0, p * n_hw_p + j)),
                pl.BlockSpec((Cout, Cin), lambda n, p, j: (0, 0)),   # resident
            ],
            out_specs=[
                pl.BlockSpec((None, None, Cout, 1), lambda n, p, j: (n, p, 0, 0)),
                pl.BlockSpec((None, None, Cout, 1), lambda n, p, j: (n, p, 0, 0)),
            ],
        ),
        compiler_params=pltpu.CompilerParams(
            dimension_semantics=("parallel", "parallel", "arbitrary"),
            vmem_limit_bytes=vmem_limit,
        ),
    )(x, w_c)

    # ------------- tiny per-channel finalize (XLA glue): fold BN into weights -------------
    ysum = jnp.sum(psum[..., 0], axis=(0, 1))         # (Cout,)
    ysq = jnp.sum(psq[..., 0], axis=(0, 1))           # (Cout,)
    mean = ysum / M
    var = jnp.maximum(ysq / M - mean * mean, 0.0)     # biased var, clamped vs cancellation
    scale = gamma.astype(jnp.float32) * jax.lax.rsqrt(var + eps)
    shift = (beta.astype(jnp.float32) - mean * scale)[:, None]        # (Cout, 1) f32
    w_scaled = (w32 * scale[:, None]).astype(compute_dtype)           # (Cout, Cin)

    # ---------------- pass 2: fused (scaled) 1x1 conv + bias + ReLU ----------------
    def conv_bn_relu_kernel(x_ref, ws_ref, shift_ref, o_ref):
        xv = x_ref[...]
        if cast_in_kernel:
            xv = xv.astype(compute_dtype)
        y = jnp.dot(ws_ref[...], xv, preferred_element_type=jnp.float32)
        o_ref[...] = jnp.maximum(y + shift_ref[...], 0.0).astype(o_ref.dtype)

    out = pl.pallas_call(
        conv_bn_relu_kernel,
        out_shape=jax.ShapeDtypeStruct((N, Cout, HW), out_dtype),
        grid_spec=pltpu.PrefetchScalarGridSpec(
            num_scalar_prefetch=0,
            grid=(N, n_hw2),
            in_specs=[
                pl.BlockSpec((None, Cin, t2), lambda n, j: (n, 0, j)),
                pl.BlockSpec((Cout, Cin), lambda n, j: (0, 0)),      # resident
                pl.BlockSpec((Cout, 1), lambda n, j: (0, 0)),        # resident
            ],
            out_specs=pl.BlockSpec((None, Cout, t2), lambda n, j: (n, 0, j)),
        ),
        compiler_params=pltpu.CompilerParams(
            dimension_semantics=("parallel", "parallel"),
            vmem_limit_bytes=vmem_limit,
        ),
    )(x, w_scaled, shift)

    # Free reshape back to NCHW (channels already on the second axis).
    return out.reshape(N, Cout, H, W)


def _reference(x_nchw, weight, gamma, beta, eps=1e-5):
    """Pure-JAX reference of Conv(1x1) + BN(train-mode) + ReLU, NCHW."""
    y = jnp.einsum("nchw,oc->nohw", x_nchw, weight[:, :, 0, 0])
    mean = y.mean(axis=(0, 2, 3), keepdims=True)
    var = y.var(axis=(0, 2, 3), keepdims=True)        # biased
    yn = (y - mean) * jax.lax.rsqrt(var + eps)
    return jnp.maximum(yn * gamma[None, :, None, None] + beta[None, :, None, None], 0.0)


if __name__ == "__main__":
    key = jax.random.PRNGKey(0)
    kx, kw, kg, kb = jax.random.split(key, 4)

    N, Cin, Cout, H, W = 2, 4, 8, 16, 16
    x = jax.random.normal(kx, (N, Cin, H, W), dtype=jnp.float32)
    # Conv2d(in_chans, out_chans, 1, 1, groups=1, bias=False).weight: (Cout, Cin, 1, 1)
    weight = jax.random.normal(kw, (Cout, Cin, 1, 1), dtype=jnp.float32) * 0.1
    # BatchNorm2d(out_chans) affine params (deterministic, non-trivial)
    gamma = 1.0 + 0.1 * jax.random.normal(kg, (Cout,), dtype=jnp.float32)
    beta = 0.1 * jax.random.normal(kb, (Cout,), dtype=jnp.float32)

    ref = _reference(x, weight, gamma, beta)

    # f32 compute path (PyTorch-matching numerics).
    out = conv_bn_relu(x, weight, gamma, beta)
    out = jax.block_until_ready(out)
    assert out.shape == (N, Cout, H, W)
    assert jnp.allclose(out, ref, atol=1e-4, rtol=1e-4), "f32 mismatch vs reference"

    # bf16 MXU path (in-kernel cast, f32 accumulation/stats) — looser tolerance.
    out_bf16 = conv_bn_relu(x, weight, gamma, beta, compute_dtype=jnp.bfloat16)
    out_bf16 = jax.block_until_ready(out_bf16)
    assert jnp.allclose(out_bf16, ref, atol=1e-1, rtol=1e-1), "bf16 mismatch vs reference"

    print("KERNEL_OK")
</pallas_src>

<mosaic_0001>
module attributes {stable_mosaic.version = 11 : i64} {
  func.func @stats_kernel(%arg0: i32, %arg1: i32, %arg2: i32, %arg3: memref<1x4x256xf32, #tpu.memory_space<vmem>>, %arg4: memref<8x4xf32, #tpu.memory_space<vmem>>, %arg5: memref<1x1x8x1xf32, #tpu.memory_space<vmem>>, %arg6: memref<1x1x8x1xf32, #tpu.memory_space<vmem>>) attributes {dimension_semantics = [#tpu.dimension_semantics<parallel>, #tpu.dimension_semantics<parallel>, #tpu.dimension_semantics<arbitrary>], iteration_bounds = array<i64: 2, 1, 1>, scalar_prefetch = 0 : i64, scratch_operands = 0 : i64, tpu.core_type = #tpu.core_type<tc>, window_params = [{transform_indices = @transform_0, window_bounds = array<i64: 1, 4, 256>}, {pipeline_mode = #tpu.pipeline_mode<synchronous>, transform_indices = @transform_1, window_bounds = array<i64: 8, 4>}, {transform_indices = @transform_2, window_bounds = array<i64: 1, 1, 8, 1>}, {transform_indices = @transform_3, window_bounds = array<i64: 1, 1, 8, 1>}]} {
    %c0_i32 = arith.constant 0 : i32
    %0 = arith.cmpi eq, %arg2, %c0_i32 : i32
    %1 = arith.extui %0 : i1 to i32
    %c0_i32_0 = arith.constant 0 : i32
    %2 = arith.cmpi ne, %1, %c0_i32_0 : i32
    scf.if %2 {
      %cst_23 = arith.constant 0.000000e+00 : f32
      %24 = vector.broadcast %cst_23 : f32 to vector<8x1xf32>
      %c0_24 = arith.constant 0 : index
      %c0_25 = arith.constant 0 : index
      %c0_26 = arith.constant 0 : index
      %c0_27 = arith.constant 0 : index
      %25 = vector.load %arg5[%c0_24, %c0_25, %c0_26, %c0_27] : memref<1x1x8x1xf32, #tpu.memory_space<vmem>>, vector<1x1x8x1xf32>
      %26 = vector.shape_cast %25 : vector<1x1x8x1xf32> to vector<8x1xf32>
      %27 = vector.shape_cast %24 : vector<8x1xf32> to vector<1x1x8x1xf32>
      tpu.vector_store %arg5[%c0_24, %c0_25, %c0_26, %c0_27], %27 {strides = array<i32>} : memref<1x1x8x1xf32, #tpu.memory_space<vmem>>, vector<1x1x8x1xf32>,
      %cst_28 = arith.constant 0.000000e+00 : f32
      %28 = vector.broadcast %cst_28 : f32 to vector<8x1xf32>
      %c0_29 = arith.constant 0 : index
      %c0_30 = arith.constant 0 : index
      %c0_31 = arith.constant 0 : index
      %c0_32 = arith.constant 0 : index
      %29 = vector.load %arg6[%c0_29, %c0_30, %c0_31, %c0_32] : memref<1x1x8x1xf32, #tpu.memory_space<vmem>>, vector<1x1x8x1xf32>
      %30 = vector.shape_cast %29 : vector<1x1x8x1xf32> to vector<8x1xf32>
      %31 = vector.shape_cast %28 : vector<8x1xf32> to vector<1x1x8x1xf32>
      tpu.vector_store %arg6[%c0_29, %c0_30, %c0_31, %c0_32], %31 {strides = array<i32>} : memref<1x1x8x1xf32, #tpu.memory_space<vmem>>, vector<1x1x8x1xf32>,
    } else {
    }
    %c0 = arith.constant 0 : index
    %c0_1 = arith.constant 0 : index
    %c0_2 = arith.constant 0 : index
    %3 = vector.load %arg3[%c0, %c0_1, %c0_2] : memref<1x4x256xf32, #tpu.memory_space<vmem>>, vector<1x4x256xf32>
    %4 = vector.shape_cast %3 : vector<1x4x256xf32> to vector<4x256xf32>
    %c0_3 = arith.constant 0 : index
    %c0_4 = arith.constant 0 : index
    %5 = vector.load %arg4[%c0_3, %c0_4] : memref<8x4xf32, #tpu.memory_space<vmem>>, vector<8x4xf32>
    %cst = arith.constant dense<0.000000e+00> : vector<8x256xf32>
    %6 = tpu.matmul %5, %4, %cst {dimension_numbers = #tpu.dot_dimension_numbers<[1], [0], [0], [1], [0, 0, 1, 1], [], []>} : vector<8x4xf32>, vector<4x256xf32>, vector<8x256xf32> -> vector<8x256xf32>
    %c0_5 = arith.constant 0 : index
    %c0_6 = arith.constant 0 : index
    %c0_7 = arith.constant 0 : index
    %c0_8 = arith.constant 0 : index
    %7 = vector.load %arg5[%c0_5, %c0_6, %c0_7, %c0_8] : memref<1x1x8x1xf32, #tpu.memory_space<vmem>>, vector<1x1x8x1xf32>
    %8 = vector.shape_cast %7 : vector<1x1x8x1xf32> to vector<8x1xf32>
    %cst_9 = arith.constant dense<0.000000e+00> : vector<8xf32>
    %9 = vector.multi_reduction <add>, %6, %cst_9 [1] : vector<8x256xf32> to vector<8xf32>
    %10 = vector.shape_cast %9 : vector<8xf32> to vector<8x1xf32>
    %11 = arith.addf %8, %10 : vector<8x1xf32>
    %c0_10 = arith.constant 0 : index
    %c0_11 = arith.constant 0 : index
    %c0_12 = arith.constant 0 : index
    %c0_13 = arith.constant 0 : index
    %12 = vector.load %arg5[%c0_10, %c0_11, %c0_12, %c0_13] : memref<1x1x8x1xf32, #tpu.memory_space<vmem>>, vector<1x1x8x1xf32>
    %13 = vector.shape_cast %12 : vector<1x1x8x1xf32> to vector<8x1xf32>
    %14 = vector.shape_cast %11 : vector<8x1xf32> to vector<1x1x8x1xf32>
    tpu.vector_store %arg5[%c0_10, %c0_11, %c0_12, %c0_13], %14 {strides = array<i32>} : memref<1x1x8x1xf32, #tpu.memory_space<vmem>>, vector<1x1x8x1xf32>,
    %c0_14 = arith.constant 0 : index
    %c0_15 = arith.constant 0 : index
    %c0_16 = arith.constant 0 : index
    %c0_17 = arith.constant 0 : index
    %15 = vector.load %arg6[%c0_14, %c0_15, %c0_16, %c0_17] : memref<1x1x8x1xf32, #tpu.memory_space<vmem>>, vector<1x1x8x1xf32>
    %16 = vector.shape_cast %15 : vector<1x1x8x1xf32> to vector<8x1xf32>
    %17 = arith.mulf %6, %6 : vector<8x256xf32>
    %cst_18 = arith.constant dense<0.000000e+00> : vector<8xf32>
    %18 = vector.multi_reduction <add>, %17, %cst_18 [1] : vector<8x256xf32> to vector<8xf32>
    %19 = vector.shape_cast %18 : vector<8xf32> to vector<8x1xf32>
    %20 = arith.addf %16, %19 : vector<8x1xf32>
    %c0_19 = arith.constant 0 : index
    %c0_20 = arith.constant 0 : index
    %c0_21 = arith.constant 0 : index
    %c0_22 = arith.constant 0 : index
    %21 = vector.load %arg6[%c0_19, %c0_20, %c0_21, %c0_22] : memref<1x1x8x1xf32, #tpu.memory_space<vmem>>, vector<1x1x8x1xf32>
    %22 = vector.shape_cast %21 : vector<1x1x8x1xf32> to vector<8x1xf32>
    %23 = vector.shape_cast %20 : vector<8x1xf32> to vector<1x1x8x1xf32>
    tpu.vector_store %arg6[%c0_19, %c0_20, %c0_21, %c0_22], %23 {strides = array<i32>} : memref<1x1x8x1xf32, #tpu.memory_space<vmem>>, vector<1x1x8x1xf32>,
    return
  }
  func.func @transform_0(%arg0: i32, %arg1: i32, %arg2: i32) -> (i32, i32, i32) {
    %c1_i32 = arith.constant 1 : i32
    %0 = arith.muli %arg1, %c1_i32 : i32
    %1 = arith.addi %0, %arg2 : i32
    %c0_i32 = arith.constant 0 : i32
    %c0_i32_0 = arith.constant 0 : i32
    return %arg0, %c0_i32, %1 : i32, i32, i32
  }
  func.func @transform_1(%arg0: i32, %arg1: i32, %arg2: i32) -> (i32, i32) {
    %c0_i32 = arith.constant 0 : i32
    %c0_i32_0 = arith.constant 0 : i32
    %c0_i32_1 = arith.constant 0 : i32
    return %c0_i32, %c0_i32_0 : i32, i32
  }
  func.func @transform_2(%arg0: i32, %arg1: i32, %arg2: i32) -> (i32, i32, i32, i32) {
    %c0_i32 = arith.constant 0 : i32
    %c0_i32_0 = arith.constant 0 : i32
    %c0_i32_1 = arith.constant 0 : i32
    return %arg0, %arg1, %c0_i32, %c0_i32_0 : i32, i32, i32, i32
  }
  func.func @transform_3(%arg0: i32, %arg1: i32, %arg2: i32) -> (i32, i32, i32, i32) {
    %c0_i32 = arith.constant 0 : i32
    %c0_i32_0 = arith.constant 0 : i32
    %c0_i32_1 = arith.constant 0 : i32
    return %arg0, %arg1, %c0_i32, %c0_i32_0 : i32, i32, i32, i32
  }
}

</mosaic_0001>

<llo_original>
// kernel: tpu_custom_call.1
$region0: #{tpu_custom_call.1}
  #allocation0 [shape = 'u32[]', space=smem, size = 0x4, offset = 0x4, fixed_abs, tag = 'smem constant byte address 0x4 - core index']
  #allocation1 [shape = 'u32[144,128]{1,0:T(1,128)}', space=vmem, size = 0x12000, scoped, tag = 'internal scratch']
  %s0 = inlined_call_operand.hbm [shape: f32[2,4,256], index: 0, kind: input, shape index: {}]
  %s1 = inlined_call_operand.vmem [shape: f32[8,4], index: 1, kind: input, shape index: {}]
  %s2 = inlined_call_operand.vmem [shape: f32[2,1,8,1], index: 2, kind: output, shape index: {0}]
  %s3 = inlined_call_operand.vmem [shape: f32[2,1,8,1], index: 3, kind: output, shape index: {1}]
  %4 = xla_tuple %s2, %s3
  %s5 = sld [smem:[#allocation0]]
  $region57: #{tpu_custom_call.1} parent=0
    _
  %s7 = ssub.s32 1, %s5
  %s8 = scalar_select 0, %s7, %s5
  $region1: #{tpu_custom_call.1} parent=0
    #allocation2 [shape = 'u8[8192]{0}', space=vmem, size = 0x2000, scoped, tag = 'input window, operand 0']
    #allocation3 [shape = 's32[2]{0}', space=sflag, size = 0x8, scoped, tag = 'scoped memory for tpu_custom_call.1']
    %9 = vsyncpa [#allocation3], 0
    %s10 = scalar_lea.sflag [#allocation3], 1
    %11 = vsyncpa %s10, 0
    loop: start=0, step=1, limit=4
    $region2: #{tpu_custom_call.1} parent=1 // loop_pre_header
      _
    $region3: #{tpu_custom_call.1} parent=1 // loop_header
      %s13 = sphi 0, %s17
      %p14 = scmp.ge.s32.totalorder %s13, 4
      %s20 = sphi 0, %s39
      %s21 = sphi 0, %s35
      %s22 = sphi 0, %s31
      %s23 = sphi 0, %s20
      %s24 = sphi 0, %s21
      %s25 = sphi 0, %s22
      %s26 = sphi 0, %s23
      %s27 = sphi 0, %s24
      %s28 = sphi 0, %s25
      %s46 = sphi 0, %s48
      %s49 = sphi 0, %s46
      %s50 = sphi 0, %s49
      %s66 = sphi 0, %s50
      %s70 = sphi 0, %s70
      %s72 = sphi 0, %s70
      %s73 = sphi 0, %s72
      %s87 = sphi 0, %s73
      %s95 = sphi 0, %s97
      %s98 = sphi 0, %s95
      %s99 = sphi 0, %s98
      %s115 = sphi 0, %s99
      %s123 = sphi 0, %s125
      %s126 = sphi 0, %s123
      %s127 = sphi 0, %s126
      %s143 = sphi 0, %s127
    $region4: #{tpu_custom_call.1} parent=1 // loop_header_branch
      %16 = sbr.rel (%p14) target = $region8
    $region5: #{tpu_custom_call.1} parent=1 // loop_body
      %s18 = ssub.s32 %s13, 1
      %s19 = ssub.s32 %s13, 2
      %s29 = sadd.s32 1, %s22
      %p30 = scmp.ge.s32.totalorder %s29, 1
      %s31 = scalar_select %p30, 0, %s29
      %s32 = sadd.s32 1, %s21
      %s33 = scalar_select %p30, %s32, %s21
      %p34 = scmp.ge.s32.totalorder %s33, 1
      %s35 = scalar_select %p34, 0, %s33
      %s36 = sadd.s32 1, %s20
      %s37 = scalar_select %p34, %s36, %s20
      %p38 = scmp.ge.s32.totalorder %s37, 2
      %s39 = scalar_select %p38, 0, %s37
      %s40 = sadd.s32 %s21, %s22
      %s41 = sadd.s32 %s35, %s31
      %s42 = ssub.s32 %s20, %s39
      %s43 = ssub.s32 %s40, %s41
      %s44 = sor.u32 %s42, %s43
      %p45 = scmp.eq.s32.totalorder %s44, 0
      %s47 = sadd.s32 %s46, 1
      %s48 = scalar_select %p45, %s46, %s47
      %p51 = pneg %p45
      %p52 = scmp.eq.s32.totalorder %s13, 1
      %p53 = por %p51, %p52
      %p54 = scmp.ne.s32.totalorder %s46, %s49
      %p55 = scmp.eq.s32.totalorder %s13, 0
      %p56 = por %p54, %p55
      %p57 = scmp.ne.s32.totalorder %s46, %s49
      %p58 = scmp.eq.s32.totalorder %s18, 1
      %p59 = por %p57, %p58
      %p60 = scmp.ne.s32.totalorder %s49, %s50
      %p61 = scmp.eq.s32.totalorder %s18, 0
      %p62 = por %p60, %p61
      %p63 = scmp.ne.s32.totalorder %s49, %s50
      %p64 = scmp.eq.s32.totalorder %s19, 1
      %p65 = por %p63, %p64
      %p67 = scmp.ne.s32.totalorder %s50, %s66
      %p68 = scmp.eq.s32.totalorder %s19, 0
      %p69 = por %p67, %p68
      %s71 = sadd.s32 %s70, 1
      %p74 = scmp.eq.s32.totalorder %s13, 1
      %p75 = scmp.ne.s32.totalorder %s70, %s72
      %p76 = scmp.eq.s32.totalorder %s13, 0
      %p77 = por %p75, %p76
      %p78 = scmp.ne.s32.totalorder %s70, %s72
      %p79 = scmp.eq.s32.totalorder %s18, 1
      %p80 = por %p78, %p79
      %p81 = scmp.ne.s32.totalorder %s72, %s73
      %p82 = scmp.eq.s32.totalorder %s18, 0
      %p83 = por %p81, %p82
      %p84 = scmp.ne.s32.totalorder %s72, %s73
      %p85 = scmp.eq.s32.totalorder %s19, 1
      %p86 = por %p84, %p85
      %p88 = scmp.ne.s32.totalorder %s73, %s87
      %p89 = scmp.eq.s32.totalorder %s19, 0
      %p90 = por %p88, %p89
      %s91 = ssub.s32 %s20, %s39
      %s92 = ssub.s32 %s21, %s35
      %s93 = sor.u32 %s91, %s92
      %p94 = scmp.eq.s32.totalorder %s93, 0
      %s96 = sadd.s32 %s95, 1
      %s97 = scalar_select %p94, %s95, %s96
      %p100 = pneg %p94
      %p101 = scmp.eq.s32.totalorder %s13, 1
      %p102 = por %p100, %p101
      %p103 = scmp.ne.s32.totalorder %s95, %s98
      %p104 = scmp.eq.s32.totalorder %s13, 0
      %p105 = por %p103, %p104
      %p106 = scmp.ne.s32.totalorder %s95, %s98
      %p107 = scmp.eq.s32.totalorder %s18, 1
      %p108 = por %p106, %p107
      %p109 = scmp.ne.s32.totalorder %s98, %s99
      %p110 = scmp.eq.s32.totalorder %s18, 0
      %p111 = por %p109, %p110
      %p112 = scmp.ne.s32.totalorder %s98, %s99
      %p113 = scmp.eq.s32.totalorder %s19, 1
      %p114 = por %p112, %p113
      %p116 = scmp.ne.s32.totalorder %s99, %s115
      %p117 = scmp.eq.s32.totalorder %s19, 0
      %p118 = por %p116, %p117
      %s119 = ssub.s32 %s20, %s39
      %s120 = ssub.s32 %s21, %s35
      %s121 = sor.u32 %s119, %s120
      %p122 = scmp.eq.s32.totalorder %s121, 0
      %s124 = sadd.s32 %s123, 1
      %s125 = scalar_select %p122, %s123, %s124
      %p128 = pneg %p122
      %p129 = scmp.eq.s32.totalorder %s13, 1
      %p130 = por %p128, %p129
      %p131 = scmp.ne.s32.totalorder %s123, %s126
      %p132 = scmp.eq.s32.totalorder %s13, 0
      %p133 = por %p131, %p132
      %p134 = scmp.ne.s32.totalorder %s123, %s126
      %p135 = scmp.eq.s32.totalorder %s18, 1
      %p136 = por %p134, %p135
      %p137 = scmp.ne.s32.totalorder %s126, %s127
      %p138 = scmp.eq.s32.totalorder %s18, 0
      %p139 = por %p137, %p138
      %p140 = scmp.ne.s32.totalorder %s126, %s127
      %p141 = scmp.eq.s32.totalorder %s19, 1
      %p142 = por %p140, %p141
      %p144 = scmp.ne.s32.totalorder %s127, %s143
      %p145 = scmp.eq.s32.totalorder %s19, 0
      %p146 = por %p144, %p145
      %p147 = scmp.le.s32.totalorder 1, %s13
      %p148 = scmp.lt.s32.totalorder %s13, 3
      %p149 = pnand %p147, %p148
      %p150 = pneg %p149
      // Predicated region
      $region9: #{tpu_custom_call.1} parent=5 // pred_check
        _
      $region10: #{tpu_custom_call.1} parent=5 // pred_check_branch
        %152 = sbr.rel (%p149) target = $region12
      $region11: #{tpu_custom_call.1} parent=5 // pred_region
        %s153 = ssub.s32 %s13, 1
        // Predicated region
        $region13: #{tpu_custom_call.1} parent=11 // pred_check
          %p154 = pneg %p83
        $region14: #{tpu_custom_call.1} parent=11 // pred_check_branch
          %156 = sbr.rel (%p154) target = $region16
        $region15: #{tpu_custom_call.1} parent=11 // pred_region
          _
        $region16: #{tpu_custom_call.1} parent=11 // pred_fallthru
          _
      $region12: #{tpu_custom_call.1} parent=5 // pred_fallthru
        _
      %p157 = scmp.lt.s32.totalorder %s13, 2
      // Predicated region
      $region17: #{tpu_custom_call.1} parent=5 // pred_check
        %p158 = pneg %p157
      $region18: #{tpu_custom_call.1} parent=5 // pred_check_branch
        %160 = sbr.rel (%p158) target = $region20
      $region19: #{tpu_custom_call.1} parent=5 // pred_region
        // Predicated region
        $region21: #{tpu_custom_call.1} parent=19 // pred_check
          %p161 = pneg %p56
        $region22: #{tpu_custom_call.1} parent=19 // pred_check_branch
          %163 = sbr.rel (%p161) target = $region24
        $region23: #{tpu_custom_call.1} parent=19 // pred_region
          %s164 = sand.u32 %s46, 1
          %s165 = scalar_lea.sflag [#allocation3], %s164
          %s166 = sand.u32 %s46, 1
          %s167 = smul.addr %s166, 8
          %s168 = scalar_lea.vmem [#allocation2], %s167
          %s169 = sadd.s32 %s21, %s22
          %s170 = smul.u32 2, %s169
          %s172 = ssub.s32 128, 128
          %173 = vsyncadd %s165, %s172
          %s174 = smul.addr %s20, 2
          %s175 = sadd.s32 %s170, %s174
          %s176 = smul.addr %s175, 64
          %s177 = scalar_lea.hbm %s0, %s176
          %s179 = sshll.u32 %s168, 4
          %s180 = int_to_ptr.vmem [resolvable:$true] %s179
          %182 = dma.hbm_to_vmem [thread:$0]  %s177, 128, %s180, %s165
        $region24: #{tpu_custom_call.1} parent=19 // pred_fallthru
          _
      $region20: #{tpu_custom_call.1} parent=5 // pred_fallthru
        _
      %p183 = scmp.le.s32.totalorder 1, %s13
      %p184 = scmp.lt.s32.totalorder %s13, 3
      %p185 = pnand %p183, %p184
      %p186 = pneg %p185
      // Predicated region
      $region25: #{tpu_custom_call.1} parent=5 // pred_check
        _
      $region26: #{tpu_custom_call.1} parent=5 // pred_check_branch
        %188 = sbr.rel (%p185) target = $region28
      $region27: #{tpu_custom_call.1} parent=5 // pred_region
        %s189 = ssub.s32 %s13, 1
        %s190 = sand.u32 %s49, 1
        %s191 = scalar_lea.sflag [#allocation3], %s190
        %s192 = sand.u32 %s49, 1
        %s193 = smul.addr %s192, 8
        %s194 = scalar_lea.vmem [#allocation2], %s193
        // Predicated region
        $region29: #{tpu_custom_call.1} parent=27 // pred_check
          %p195 = pneg %p62
        $region30: #{tpu_custom_call.1} parent=27 // pred_check_branch
          %197 = sbr.rel (%p195) target = $region32
        $region31: #{tpu_custom_call.1} parent=27 // pred_region
          %198 = dma.done %s191, 128
        $region32: #{tpu_custom_call.1} parent=27 // pred_fallthru
          _
        %s199 = sand.u32 %s49, 1
        %s200 = scalar_lea.sflag [#allocation3], %s199
        %s201 = sand.u32 %s49, 1
        %s202 = smul.addr %s201, 8
        %s203 = scalar_lea.vmem [#allocation2], %s202
        %p204 = pneg %p62
        %p205 = pneg %p59
        %p206 = pneg %p83
        %p207 = pneg %p80
        %p208 = pneg %p111
        %p209 = pneg %p108
        %p210 = scmp.lt.s32.totalorder %s23, 1
        %s211 = scalar_select %p210, %s23, 1
        %p212 = scmp.lt.s32.totalorder %s24, 0
        %s213 = scalar_select %p212, %s24, 0
        %s214 = sadd.s32 %s213, %s211
        %s215 = smul.addr %s214, 8
        %s216 = scalar_lea.vmem %s2, %s215
        %p217 = pneg %p139
        %p218 = pneg %p136
        %p219 = scmp.lt.s32.totalorder %s23, 1
        %s220 = scalar_select %p219, %s23, 1
        %p221 = scmp.lt.s32.totalorder %s24, 0
        %s222 = scalar_select %p221, %s24, 0
        %s223 = sadd.s32 %s222, %s220
        %s224 = smul.addr %s223, 8
        %s225 = scalar_lea.vmem %s3, %s224
        %s226 = sadd.s32 %s24, %s25
        %s227 = smul.u32 2, %s226
        %p228 = scmp.lt.s32.totalorder %s23, 1
        %s229 = scalar_select %p228, %s23, 1
        %p230 = scmp.lt.s32.totalorder %s24, 0
        %s231 = scalar_select %p230, %s24, 0
        %s232 = sadd.s32 %s231, %s229
        %s233 = smul.addr %s232, 8
        %s234 = scalar_lea.vmem %s2, %s233
        %p235 = scmp.lt.s32.totalorder %s23, 1
        %s236 = scalar_select %p235, %s23, 1
        %p237 = scmp.lt.s32.totalorder %s24, 0
        %s238 = scalar_select %p237, %s24, 0
        %s239 = sadd.s32 %s238, %s236
        %s240 = smul.addr %s239, 8
        %s241 = scalar_lea.vmem %s3, %s240
        %p242 = scmp.eq.s32.totalorder %s25, 0
        // Predicated region
        $region33: #{tpu_custom_call.1} parent=27 // pred_check
          %p243 = pneg %p242
        $region34: #{tpu_custom_call.1} parent=27 // pred_check_branch
          %245 = sbr.rel (%p243) target = $region36
        $region35: #{tpu_custom_call.1} parent=27 // pred_region
          %vm246 = vcmask 7168
          %247 = vst.msk [vmem:[%s234] sm:$0xff] %vm246, 0.0
          %248 = vst.msk [vmem:[%s241] sm:$0xff] %vm246, 0.0
        $region36: #{tpu_custom_call.1} parent=27 // pred_fallthru
          _
        %v249 = vld [vmem:[%s194] sm:$0xff]
        %v250 = vld [vmem:[%s1] sm:$0xff]
        %v252 = vcombine.high %v249, %v249
        %vm253 = vcmask 31744
        %v255 = vsel %vm253, %v250, 0
        %vm257 = vcmask 1043456
        %v258 = vsel %vm257, %v249, 0
        %v260 = vsel %vm257, %v252, 0
        %262 = vmatprep.subr.mxu0 %v260
        %263 = vmatpush1.msra.mxu0 %v258
        %264 = vmatprep.subr.mxu0 0.0
        %265 = vmatpush1.msra.mxu0 0.0
        %266 = vmatprep.subr.mxu0 0.0
        %267 = vmatpush1.msra.mxu0 0.0
        %268 = vmatprep.subr.mxu0 0.0
        %269 = vmatpush1.msra.mxu0 0.0
        %270 = vmatprep.subr.mxu0 0.0
        %271 = vmatpush1.msra.mxu0 0.0
        %272 = vmatprep.subr.mxu0 0.0
        %273 = vmatpush1.msra.mxu0 0.0
        %274 = vmatprep.subr.mxu0 0.0
        %275 = vmatpush1.msra.mxu0 0.0
        %276 = vmatprep.subr.mxu0 0.0
        %277 = vmatpush1.msra.mxu0 0.0
        %278 = vmatprep.subr.mxu0 0.0
        %279 = vmatpush1.msra.mxu0 0.0
        %280 = vmatprep.subr.mxu0 0.0
        %281 = vmatpush1.msra.mxu0 0.0
        %282 = vmatprep.subr.mxu0 0.0
        %283 = vmatpush1.msra.mxu0 0.0
        %284 = vmatprep.subr.mxu0 0.0
        %285 = vmatpush1.msra.mxu0 0.0
        %286 = vmatprep.subr.mxu0 0.0
        %287 = vmatpush1.msra.mxu0 0.0
        %288 = vmatprep.subr.mxu0 0.0
        %289 = vmatpush1.msra.mxu0 0.0
        %290 = vmatprep.subr.mxu0 0.0
        %291 = vmatpush1.msra.mxu0 0.0
        %292 = vmatprep.subr.mxu0 0.0
        %293 = vmatpush1.msra.mxu0 0.0
        %294 = vmatprep.subr.mxu0 0.0
        %295 = vmatpush1.msra.mxu0 0.0
        %296 = vmatprep.subr.mxu0 0.0
        %297 = vmatpush1.msra.mxu0 0.0
        %298 = vmatprep.subr.mxu0 0.0
        %299 = vmatpush1.msra.mxu0 0.0
        %300 = vmatprep.subr.mxu0 0.0
        %301 = vmatpush1.msra.mxu0 0.0
        %302 = vmatprep.subr.mxu0 0.0
        %303 = vmatpush1.msra.mxu0 0.0
        %304 = vmatprep.subr.mxu0 0.0
        %305 = vmatpush1.msra.mxu0 0.0
        %306 = vmatprep.subr.mxu0 0.0
        %307 = vmatpush1.msra.mxu0 0.0
        %308 = vmatprep.subr.mxu0 0.0
        %309 = vmatpush1.msra.mxu0 0.0
        %310 = vmatprep.subr.mxu0 0.0
        %311 = vmatpush1.msra.mxu0 0.0
        %312 = vmatprep.subr.mxu0 0.0
        %313 = vmatpush1.msra.mxu0 0.0
        %314 = vmatprep.subr.mxu0 0.0
        %315 = vmatpush1.msra.mxu0 0.0
        %316 = vmatprep.subr.mxu0 0.0
        %317 = vmatpush1.msra.mxu0 0.0
        %318 = vmatprep.subr.mxu0 0.0
        %319 = vmatpush1.msra.mxu0 0.0
        %320 = vmatprep.subr.mxu0 0.0
        %321 = vmatpush1.msra.mxu0 0.0
        %322 = vmatprep.subr.mxu0 0.0
        %323 = vmatpush1.msra.mxu0 0.0
        %324 = vmatprep.subr.mxu0 0.0
        %325 = vmatpush1.msra.mxu0 0.0
        %326 = vmatprep.mubr.f32.mxu0 0.0
        %327 = vmatmul.mubr.f32.gmra.mrb[0].mxu0 %v255
        %v328 = vpop.f32.mrb[0].mxu0
        %v329 = vadd.f32 0.0, %v328
        %v330 = vpop.f32.mrb[0].mxu0
        %v331 = vadd.f32 0.0, %v330
        %332 = vdwg.mxu0
        %v333 = vld [vmem:[%s234] sm:$0xff]
        %v334 = vadd.f32 %v329, %v331
        %335 = vadd.xlane.f32.xlu0 %v334
        %v336 = vpop.xlane.xlu0 %335
        %v337 = vadd.f32 %v333, %v336
        %vm338 = vcmask 7168
        %339 = vst.msk [vmem:[%s234] sm:$0xff] %vm338, %v337
        %v340 = vld [vmem:[%s241] sm:$0xff]
        %v341 = vmul.f32 %v329, %v329
        %v342 = vmul.f32 %v331, %v331
        %v343 = vadd.f32 %v341, %v342
        %344 = vadd.xlane.f32.xlu0 %v343
        %v345 = vpop.xlane.xlu0 %344
        %v346 = vadd.f32 %v340, %v345
        %347 = vst.msk [vmem:[%s241] sm:$0xff] %vm338, %v346
        %p348 = scmp.lt.s32.totalorder %s23, 1
        %s349 = scalar_select %p348, %s23, 1
        %p350 = scmp.lt.s32.totalorder %s24, 0
        %s351 = scalar_select %p350, %s24, 0
        %s352 = sadd.s32 %s351, %s349
        %s353 = smul.addr %s352, 8
        %s354 = scalar_lea.vmem %s2, %s353
        %p355 = scmp.lt.s32.totalorder %s23, 1
        %s356 = scalar_select %p355, %s23, 1
        %p357 = scmp.lt.s32.totalorder %s24, 0
        %s358 = scalar_select %p357, %s24, 0
        %s359 = sadd.s32 %s358, %s356
        %s360 = smul.addr %s359, 8
        %s361 = scalar_lea.vmem %s3, %s360
        // Predicated region
        $region37: #{tpu_custom_call.1} parent=27 // pred_check
          %p362 = pneg %p108
        $region38: #{tpu_custom_call.1} parent=27 // pred_check_branch
          %364 = sbr.rel (%p362) target = $region40
        $region39: #{tpu_custom_call.1} parent=27 // pred_region
          _
        $region40: #{tpu_custom_call.1} parent=27 // pred_fallthru
          _
        // Predicated region
        $region41: #{tpu_custom_call.1} parent=27 // pred_check
          %p365 = pneg %p136
        $region42: #{tpu_custom_call.1} parent=27 // pred_check_branch
          %367 = sbr.rel (%p365) target = $region44
        $region43: #{tpu_custom_call.1} parent=27 // pred_region
          _
        $region44: #{tpu_custom_call.1} parent=27 // pred_fallthru
          _
      $region28: #{tpu_custom_call.1} parent=5 // pred_fallthru
        _
      %p368 = scmp.le.s32.totalorder 2, %s13
      // Predicated region
      $region45: #{tpu_custom_call.1} parent=5 // pred_check
        %p369 = pneg %p368
      $region46: #{tpu_custom_call.1} parent=5 // pred_check_branch
        %371 = sbr.rel (%p369) target = $region48
      $region47: #{tpu_custom_call.1} parent=5 // pred_region
        %s372 = ssub.s32 %s13, 2
        // Predicated region
        $region49: #{tpu_custom_call.1} parent=47 // pred_check
          %p373 = pneg %p114
        $region50: #{tpu_custom_call.1} parent=47 // pred_check_branch
          %375 = sbr.rel (%p373) target = $region52
        $region51: #{tpu_custom_call.1} parent=47 // pred_region
          %p376 = scmp.lt.s32.totalorder %s26, 1
          %s377 = scalar_select %p376, %s26, 1
          %p378 = scmp.lt.s32.totalorder %s27, 0
          %s379 = scalar_select %p378, %s27, 0
          %s380 = sadd.s32 %s379, %s377
          %s381 = smul.addr %s380, 8
          %s382 = scalar_lea.vmem %s2, %s381
        $region52: #{tpu_custom_call.1} parent=47 // pred_fallthru
          _
        // Predicated region
        $region53: #{tpu_custom_call.1} parent=47 // pred_check
          %p383 = pneg %p142
        $region54: #{tpu_custom_call.1} parent=47 // pred_check_branch
          %385 = sbr.rel (%p383) target = $region56
        $region55: #{tpu_custom_call.1} parent=47 // pred_region
          %p386 = scmp.lt.s32.totalorder %s26, 1
          %s387 = scalar_select %p386, %s26, 1
          %p388 = scmp.lt.s32.totalorder %s27, 0
          %s389 = scalar_select %p388, %s27, 0
          %s390 = sadd.s32 %s389, %s387
          %s391 = smul.addr %s390, 8
          %s392 = scalar_lea.vmem %s3, %s391
        $region56: #{tpu_custom_call.1} parent=47 // pred_fallthru
          _
      $region48: #{tpu_custom_call.1} parent=5 // pred_fallthru
        _
    $region6: #{tpu_custom_call.1} parent=1 // loop_footer
      %s17 = sadd.s32 1, %s13
    $region7: #{tpu_custom_call.1} parent=1 // loop_footer_branch
      %12 = sbr.rel target = $region3
    $region8: #{tpu_custom_call.1} parent=1 // loop_exit
      _
    %393 = vsyncpa [#allocation3], 1
    %s394 = scalar_lea.sflag [#allocation3], 1
    %395 = vsyncpa %s394, 1

</llo_original>
